<compile_context>
chip_gen: v7x
topology: tpu7x:2x2x1
jax: 0.10.0
libtpu: 0.0.40
codegen_flags: <defaults>
</compile_context>

<pallas_src>
import jax
import jax.numpy as jnp
from jax.experimental import pallas as pl
from jax.experimental.pallas import tpu as pltpu

SIGMA = 25.0
EPS = 1e-5


def _diffusion_loss_kernel(t_ref, sr_ref, hr_ref, z_ref,
                           w1t_ref, w2t_ref, b1_ref, wt_ref, b2_ref,
                           out_ref, xcat_ref):
    bb = sr_ref.shape[0]          # batch elements handled by this grid step
    c = sr_ref.shape[1]           # channels (sublane axis)
    bstart = pl.program_id(0) * bb
    log_sigma = jnp.log(jnp.float32(SIGMA))

    # small weights, loaded once per step
    w1t = w1t_ref[...]            # (HID, 2C)
    w2t = w2t_ref[...]            # (C, HID)
    b1 = b1_ref[...]              # (HID, 1)
    wt = wt_ref[...]              # (HID, 1)
    b2 = b2_ref[...]              # (C, 1)

    acc = jnp.float32(0.0)
    for i in range(bb):           # static unroll over the batch sub-block
        # marginal_prob_std(t, sigma) = sqrt((sigma^(2t) - 1) / 2 / ln(sigma))
        t = t_ref[bstart + i]
        std = jnp.sqrt((jnp.exp(2.0 * t * log_sigma) - 1.0) / (2.0 * log_sigma))

        sr = sr_ref[i].astype(jnp.float32)     # (C, HW)  lane-dense
        hr = hr_ref[i].astype(jnp.float32)
        zz = z_ref[i].astype(jnp.float32)

        # perturbed_x = x_start + z * std
        perturbed = hr + zz * std

        # fused concat([SR, perturbed], channel) staged in VMEM -> one matmul
        xcat_ref[:c, :] = sr
        xcat_ref[c:, :] = perturbed

        # noise-level conditioning bias hoisted once per sample
        bias = b1 + t * wt                                          # (HID, 1)

        h = jnp.dot(w1t, xcat_ref[...],
                    preferred_element_type=jnp.float32) + bias      # (HID, HW)
        h = jnp.maximum(h, 0.0)
        score = jnp.dot(w2t, h,
                        preferred_element_type=jnp.float32) + b2    # (C, HW)

        # per-sample squared-error sum over (C, H, W)
        resid = score * std + zz
        acc = acc + jnp.sum(resid * resid)

    # lane-dense partial-sum block for this grid step; mean taken in JAX
    out_ref[...] = jnp.zeros_like(out_ref) + acc


def _pick_batch_block(batch, bytes_per_elem, budget=4 << 20):
    """Largest divisor of `batch` whose 3-input block stays within `budget`."""
    bb = max(1, min(batch, budget // max(bytes_per_elem, 1)))
    while batch % bb:
        bb -= 1
    return bb


def gaussian_diffusion_loss(x_sr, x_hr, random_t, z, params, *, input_dtype=jnp.float32):
    """x_sr, x_hr, z: NCHW [B, C, H, W]; random_t: [B].

    input_dtype=jnp.bfloat16 halves HBM traffic on v5e/v6e (kernel upcasts for
    elementwise math); default f32 matches the PyTorch module bit-for-bit-ish.
    """
    B, C, H, W = x_hr.shape
    HW = H * W
    # FREE reshape of NCHW -> (B, C, H*W): channels on sublanes, spatial on lanes.
    to_flat = lambda a: a.reshape(B, C, HW).astype(input_dtype)
    sr_f, hr_f, z_f = to_flat(x_sr), to_flat(x_hr), to_flat(z)
    t1 = random_t.reshape(B).astype(jnp.float32)

    w1, b1, wt, w2, b2 = params
    hidden = w1.shape[1]
    # pre-transpose so the kernel contracts with HW on lanes
    w1t = jnp.asarray(w1, jnp.float32).T                 # (HID, 2C)
    w2t = jnp.asarray(w2, jnp.float32).T                 # (C, HID)
    b1c = jnp.asarray(b1, jnp.float32).reshape(hidden, 1)
    wtc = jnp.asarray(wt, jnp.float32).reshape(hidden, 1)
    b2c = jnp.asarray(b2, jnp.float32).reshape(C, 1)

    itemsize = jnp.dtype(input_dtype).itemsize
    bb = _pick_batch_block(B, 3 * C * HW * itemsize)
    nblk = B // bb
    # TODO(synk): at real image resolutions also grid-tile the HW (lane) axis and
    # size blocks against 64 MiB VMEM on v7x (raise vmem_limit_bytes if needed).

    per_block = lambda: pl.BlockSpec((bb, C, HW), lambda b: (b, 0, 0))
    full = lambda a: pl.BlockSpec(a.shape, lambda b: (0,) * a.ndim)

    out = pl.pallas_call(
        _diffusion_loss_kernel,
        out_shape=jax.ShapeDtypeStruct((nblk, 8, 128), jnp.float32),
        grid=(nblk,),
        in_specs=[
            pl.BlockSpec(memory_space=pltpu.MemorySpace.SMEM),   # random_t
            per_block(), per_block(), per_block(),               # SR, HR, z
            full(w1t), full(w2t), full(b1c), full(wtc), full(b2c),
        ],
        out_specs=pl.BlockSpec((1, 8, 128), lambda b: (b, 0, 0)),
        scratch_shapes=[pltpu.VMEM((2 * C, HW), jnp.float32)],   # fused concat buffer
        compiler_params=pltpu.CompilerParams(dimension_semantics=("parallel",)),
    )(t1, sr_f, hr_f, z_f, w1t, w2t, b1c, wtc, b2c)

    # per-step partial sums -> batch mean in plain JAX
    return jnp.sum(out[:, 0, 0]) / B


def _reference_loss(x_sr, x_hr, random_t, z, params):
    """Pure-JAX reference mirroring GaussianDiffusion.loss_fn."""
    B, C, H, W = x_hr.shape
    w1, b1, wt, w2, b2 = params
    std = jnp.sqrt((SIGMA ** (2.0 * random_t) - 1.0) / 2.0 / jnp.log(SIGMA))     # (B,)
    perturbed = x_hr + z * std[:, None, None, None]
    inp = jnp.concatenate([x_sr, perturbed], axis=1)                              # (B, 2C, H, W)
    inp_f = jnp.transpose(inp, (0, 2, 3, 1)).reshape(B, H * W, 2 * C)
    h = jnp.maximum(inp_f @ w1 + b1[None, None] + random_t[:, None, None] * wt[None, None], 0.0)
    score_f = h @ w2 + b2[None, None]                                             # (B, HW, C)
    score = jnp.transpose(score_f.reshape(B, H, W, C), (0, 3, 1, 2))
    per_sample = jnp.sum((score * std[:, None, None, None] + z) ** 2, axis=(1, 2, 3))
    return jnp.mean(per_sample)


if __name__ == "__main__":
    B, C, H, W, HID = 2, 4, 16, 16, 32

    key = jax.random.PRNGKey(0)
    k_hr, k_sr, k_t, k_z, k_w1, k_wt, k_w2 = jax.random.split(key, 7)

    # data (x = {'HR': ..., 'SR': ...})
    x_hr = jax.random.normal(k_hr, (B, C, H, W), jnp.float32)
    x_sr = jax.random.normal(k_sr, (B, C, H, W), jnp.float32)
    # random_t = rand(B) * (1 - eps) + eps ; z = randn_like(HR)
    random_t = jax.random.uniform(k_t, (B,), jnp.float32) * (1.0 - EPS) + EPS
    z = jax.random.normal(k_z, (B, C, H, W), jnp.float32)

    # deterministic synthetic denoise_fn parameters (per-pixel MLP, 2C -> HID -> C)
    w1 = 0.1 * jax.random.normal(k_w1, (2 * C, HID), jnp.float32)
    b1 = jnp.zeros((HID,), jnp.float32)
    wt = 0.1 * jax.random.normal(k_wt, (HID,), jnp.float32)   # noise-level embedding
    w2 = 0.1 * jax.random.normal(k_w2, (HID, C), jnp.float32)
    b2 = jnp.zeros((C,), jnp.float32)
    params = (w1, b1, wt, w2, b2)

    loss = gaussian_diffusion_loss(x_sr, x_hr, random_t, z, params)
    loss = jax.block_until_ready(loss)

    ref = jax.block_until_ready(_reference_loss(x_sr, x_hr, random_t, z, params))
    assert jnp.allclose(loss, ref, rtol=2e-4, atol=1e-3), (loss, ref)

    print("KERNEL_OK")
</pallas_src>

<mosaic_0001>
module attributes {stable_mosaic.version = 11 : i64} {
  func.func @_diffusion_loss_kernel(%arg0: i32, %arg1: memref<2xf32, #tpu.memory_space<smem>>, %arg2: memref<2x4x256xf32, #tpu.memory_space<vmem>>, %arg3: memref<2x4x256xf32, #tpu.memory_space<vmem>>, %arg4: memref<2x4x256xf32, #tpu.memory_space<vmem>>, %arg5: memref<32x8xf32, #tpu.memory_space<vmem>>, %arg6: memref<4x32xf32, #tpu.memory_space<vmem>>, %arg7: memref<32x1xf32, #tpu.memory_space<vmem>>, %arg8: memref<32x1xf32, #tpu.memory_space<vmem>>, %arg9: memref<4x1xf32, #tpu.memory_space<vmem>>, %arg10: memref<1x8x128xf32, #tpu.memory_space<vmem>>, %arg11: memref<8x256xf32, #tpu.memory_space<vmem>>) attributes {dimension_semantics = [#tpu.dimension_semantics<parallel>], iteration_bounds = array<i64: 1>, scalar_prefetch = 0 : i64, scratch_operands = 1 : i64, tpu.core_type = #tpu.core_type<tc>, window_params = [{transform_indices = @transform_0, window_bounds = array<i64: 2>}, {transform_indices = @transform_1, window_bounds = array<i64: 2, 4, 256>}, {transform_indices = @transform_2, window_bounds = array<i64: 2, 4, 256>}, {transform_indices = @transform_3, window_bounds = array<i64: 2, 4, 256>}, {pipeline_mode = #tpu.pipeline_mode<synchronous>, transform_indices = @transform_4, window_bounds = array<i64: 32, 8>}, {pipeline_mode = #tpu.pipeline_mode<synchronous>, transform_indices = @transform_5, window_bounds = array<i64: 4, 32>}, {pipeline_mode = #tpu.pipeline_mode<synchronous>, transform_indices = @transform_6, window_bounds = array<i64: 32, 1>}, {pipeline_mode = #tpu.pipeline_mode<synchronous>, transform_indices = @transform_7, window_bounds = array<i64: 32, 1>}, {pipeline_mode = #tpu.pipeline_mode<synchronous>, transform_indices = @transform_8, window_bounds = array<i64: 4, 1>}, {transform_indices = @transform_9, window_bounds = array<i64: 1, 8, 128>}]} {
    %c2_i32 = arith.constant 2 : i32
    %0 = arith.muli %arg0, %c2_i32 : i32
    %cst = arith.constant 2.500000e+01 : f32
    %1 = math.log %cst : f32
    %c0 = arith.constant 0 : index
    %c0_0 = arith.constant 0 : index
    %2 = vector.load %arg5[%c0, %c0_0] : memref<32x8xf32, #tpu.memory_space<vmem>>, vector<32x8xf32>
    %c0_1 = arith.constant 0 : index
    %c0_2 = arith.constant 0 : index
    %3 = vector.load %arg6[%c0_1, %c0_2] : memref<4x32xf32, #tpu.memory_space<vmem>>, vector<4x32xf32>
    %c0_3 = arith.constant 0 : index
    %c0_4 = arith.constant 0 : index
    %4 = vector.load %arg7[%c0_3, %c0_4] : memref<32x1xf32, #tpu.memory_space<vmem>>, vector<32x1xf32>
    %c0_5 = arith.constant 0 : index
    %c0_6 = arith.constant 0 : index
    %5 = vector.load %arg8[%c0_5, %c0_6] : memref<32x1xf32, #tpu.memory_space<vmem>>, vector<32x1xf32>
    %c0_7 = arith.constant 0 : index
    %c0_8 = arith.constant 0 : index
    %6 = vector.load %arg9[%c0_7, %c0_8] : memref<4x1xf32, #tpu.memory_space<vmem>>, vector<4x1xf32>
    %c0_i32 = arith.constant 0 : i32
    %7 = arith.addi %0, %c0_i32 : i32
    %8 = arith.index_cast %7 : i32 to index
    %9 = memref.load %arg1[%8] : memref<2xf32, #tpu.memory_space<smem>>
    %cst_9 = arith.constant 2.000000e+00 : f32
    %10 = arith.mulf %cst_9, %9 : f32
    %11 = arith.mulf %10, %1 : f32
    %12 = math.exp %11 : f32
    %cst_10 = arith.constant 1.000000e+00 : f32
    %13 = arith.subf %12, %cst_10 : f32
    %cst_11 = arith.constant 2.000000e+00 : f32
    %14 = arith.mulf %cst_11, %1 : f32
    %15 = arith.divf %13, %14 : f32
    %16 = math.sqrt %15 : f32
    %c0_12 = arith.constant 0 : index
    %c0_13 = arith.constant 0 : index
    %c0_14 = arith.constant 0 : index
    %17 = vector.load %arg2[%c0_12, %c0_13, %c0_14] : memref<2x4x256xf32, #tpu.memory_space<vmem>>, vector<1x4x256xf32>
    %18 = vector.shape_cast %17 : vector<1x4x256xf32> to vector<4x256xf32>
    %c0_15 = arith.constant 0 : index
    %c0_16 = arith.constant 0 : index
    %c0_17 = arith.constant 0 : index
    %19 = vector.load %arg3[%c0_15, %c0_16, %c0_17] : memref<2x4x256xf32, #tpu.memory_space<vmem>>, vector<1x4x256xf32>
    %20 = vector.shape_cast %19 : vector<1x4x256xf32> to vector<4x256xf32>
    %c0_18 = arith.constant 0 : index
    %c0_19 = arith.constant 0 : index
    %c0_20 = arith.constant 0 : index
    %21 = vector.load %arg4[%c0_18, %c0_19, %c0_20] : memref<2x4x256xf32, #tpu.memory_space<vmem>>, vector<1x4x256xf32>
    %22 = vector.shape_cast %21 : vector<1x4x256xf32> to vector<4x256xf32>
    %23 = vector.broadcast %16 : f32 to vector<4x256xf32>
    %24 = arith.mulf %22, %23 : vector<4x256xf32>
    %25 = arith.addf %20, %24 : vector<4x256xf32>
    %c0_21 = arith.constant 0 : index
    %c0_22 = arith.constant 0 : index
    %26 = vector.load %arg11[%c0_21, %c0_22] : memref<8x256xf32, #tpu.memory_space<vmem>>, vector<4x256xf32>
    tpu.vector_store %arg11[%c0_21, %c0_22], %18 {strides = array<i32>} : memref<8x256xf32, #tpu.memory_space<vmem>>, vector<4x256xf32>,
    %c4 = arith.constant 4 : index
    %c0_23 = arith.constant 0 : index
    %27 = vector.load %arg11[%c4, %c0_23] : memref<8x256xf32, #tpu.memory_space<vmem>>, vector<4x256xf32>
    tpu.vector_store %arg11[%c4, %c0_23], %25 {strides = array<i32>} : memref<8x256xf32, #tpu.memory_space<vmem>>, vector<4x256xf32>,
    %28 = vector.broadcast %9 : f32 to vector<32x1xf32>
    %29 = arith.mulf %28, %5 : vector<32x1xf32>
    %30 = arith.addf %4, %29 : vector<32x1xf32>
    %c0_24 = arith.constant 0 : index
    %c0_25 = arith.constant 0 : index
    %31 = vector.load %arg11[%c0_24, %c0_25] : memref<8x256xf32, #tpu.memory_space<vmem>>, vector<8x256xf32>
    %cst_26 = arith.constant dense<0.000000e+00> : vector<32x256xf32>
    %32 = tpu.matmul %2, %31, %cst_26 {dimension_numbers = #tpu.dot_dimension_numbers<[1], [0], [0], [1], [0, 0, 1, 1], [], []>} : vector<32x8xf32>, vector<8x256xf32>, vector<32x256xf32> -> vector<32x256xf32>
    %33 = vector.broadcast %30 : vector<32x1xf32> to vector<32x256xf32>
    %34 = arith.addf %32, %33 : vector<32x256xf32>
    %cst_27 = arith.constant 0.000000e+00 : f32
    %35 = vector.broadcast %cst_27 : f32 to vector<32x256xf32>
    %36 = arith.maximumf %34, %35 : vector<32x256xf32>
    %cst_28 = arith.constant dense<0.000000e+00> : vector<4x256xf32>
    %37 = tpu.matmul %3, %36, %cst_28 {dimension_numbers = #tpu.dot_dimension_numbers<[1], [0], [0], [1], [0, 0, 1, 1], [], []>} : vector<4x32xf32>, vector<32x256xf32>, vector<4x256xf32> -> vector<4x256xf32>
    %38 = vector.broadcast %6 : vector<4x1xf32> to vector<4x256xf32>
    %39 = arith.addf %37, %38 : vector<4x256xf32>
    %40 = vector.broadcast %16 : f32 to vector<4x256xf32>
    %41 = arith.mulf %39, %40 : vector<4x256xf32>
    %42 = arith.addf %41, %22 : vector<4x256xf32>
    %43 = arith.mulf %42, %42 : vector<4x256xf32>
    %44 = vector.shape_cast %43 : vector<4x256xf32> to vector<1x4x256xf32>
    %cst_29 = arith.constant dense<0.000000e+00> : vector<1xf32>
    %45 = vector.multi_reduction <add>, %44, %cst_29 [1, 2] : vector<1x4x256xf32> to vector<1xf32>
    %46 = vector.shape_cast %45 : vector<1xf32> to vector<1x1x1xf32>
    %47 = vector.extract %46[0, 0, 0] : f32 from vector<1x1x1xf32>
    %cst_30 = arith.constant 0.000000e+00 : f32
    %48 = arith.addf %cst_30, %47 : f32
    %c1_i32 = arith.constant 1 : i32
    %49 = arith.addi %0, %c1_i32 : i32
    %50 = arith.index_cast %49 : i32 to index
    %51 = memref.load %arg1[%50] : memref<2xf32, #tpu.memory_space<smem>>
    %cst_31 = arith.constant 2.000000e+00 : f32
    %52 = arith.mulf %cst_31, %51 : f32
    %53 = arith.mulf %52, %1 : f32
    %54 = math.exp %53 : f32
    %cst_32 = arith.constant 1.000000e+00 : f32
    %55 = arith.subf %54, %cst_32 : f32
    %cst_33 = arith.constant 2.000000e+00 : f32
    %56 = arith.mulf %cst_33, %1 : f32
    %57 = arith.divf %55, %56 : f32
    %58 = math.sqrt %57 : f32
    %c1 = arith.constant 1 : index
    %c0_34 = arith.constant 0 : index
    %c0_35 = arith.constant 0 : index
    %59 = vector.load %arg2[%c1, %c0_34, %c0_35] : memref<2x4x256xf32, #tpu.memory_space<vmem>>, vector<1x4x256xf32>
    %60 = vector.shape_cast %59 : vector<1x4x256xf32> to vector<4x256xf32>
    %c1_36 = arith.constant 1 : index
    %c0_37 = arith.constant 0 : index
    %c0_38 = arith.constant 0 : index
    %61 = vector.load %arg3[%c1_36, %c0_37, %c0_38] : memref<2x4x256xf32, #tpu.memory_space<vmem>>, vector<1x4x256xf32>
    %62 = vector.shape_cast %61 : vector<1x4x256xf32> to vector<4x256xf32>
    %c1_39 = arith.constant 1 : index
    %c0_40 = arith.constant 0 : index
    %c0_41 = arith.constant 0 : index
    %63 = vector.load %arg4[%c1_39, %c0_40, %c0_41] : memref<2x4x256xf32, #tpu.memory_space<vmem>>, vector<1x4x256xf32>
    %64 = vector.shape_cast %63 : vector<1x4x256xf32> to vector<4x256xf32>
    %65 = vector.broadcast %58 : f32 to vector<4x256xf32>
    %66 = arith.mulf %64, %65 : vector<4x256xf32>
    %67 = arith.addf %62, %66 : vector<4x256xf32>
    %c0_42 = arith.constant 0 : index
    %c0_43 = arith.constant 0 : index
    %68 = vector.load %arg11[%c0_42, %c0_43] : memref<8x256xf32, #tpu.memory_space<vmem>>, vector<4x256xf32>
    tpu.vector_store %arg11[%c0_42, %c0_43], %60 {strides = array<i32>} : memref<8x256xf32, #tpu.memory_space<vmem>>, vector<4x256xf32>,
    %c4_44 = arith.constant 4 : index
    %c0_45 = arith.constant 0 : index
    %69 = vector.load %arg11[%c4_44, %c0_45] : memref<8x256xf32, #tpu.memory_space<vmem>>, vector<4x256xf32>
    tpu.vector_store %arg11[%c4_44, %c0_45], %67 {strides = array<i32>} : memref<8x256xf32, #tpu.memory_space<vmem>>, vector<4x256xf32>,
    %70 = vector.broadcast %51 : f32 to vector<32x1xf32>
    %71 = arith.mulf %70, %5 : vector<32x1xf32>
    %72 = arith.addf %4, %71 : vector<32x1xf32>
    %c0_46 = arith.constant 0 : index
    %c0_47 = arith.constant 0 : index
    %73 = vector.load %arg11[%c0_46, %c0_47] : memref<8x256xf32, #tpu.memory_space<vmem>>, vector<8x256xf32>
    %cst_48 = arith.constant dense<0.000000e+00> : vector<32x256xf32>
    %74 = tpu.matmul %2, %73, %cst_48 {dimension_numbers = #tpu.dot_dimension_numbers<[1], [0], [0], [1], [0, 0, 1, 1], [], []>} : vector<32x8xf32>, vector<8x256xf32>, vector<32x256xf32> -> vector<32x256xf32>
    %75 = vector.broadcast %72 : vector<32x1xf32> to vector<32x256xf32>
    %76 = arith.addf %74, %75 : vector<32x256xf32>
    %cst_49 = arith.constant 0.000000e+00 : f32
    %77 = vector.broadcast %cst_49 : f32 to vector<32x256xf32>
    %78 = arith.maximumf %76, %77 : vector<32x256xf32>
    %cst_50 = arith.constant dense<0.000000e+00> : vector<4x256xf32>
    %79 = tpu.matmul %3, %78, %cst_50 {dimension_numbers = #tpu.dot_dimension_numbers<[1], [0], [0], [1], [0, 0, 1, 1], [], []>} : vector<4x32xf32>, vector<32x256xf32>, vector<4x256xf32> -> vector<4x256xf32>
    %80 = vector.broadcast %6 : vector<4x1xf32> to vector<4x256xf32>
    %81 = arith.addf %79, %80 : vector<4x256xf32>
    %82 = vector.broadcast %58 : f32 to vector<4x256xf32>
    %83 = arith.mulf %81, %82 : vector<4x256xf32>
    %84 = arith.addf %83, %64 : vector<4x256xf32>
    %85 = arith.mulf %84, %84 : vector<4x256xf32>
    %86 = vector.shape_cast %85 : vector<4x256xf32> to vector<1x4x256xf32>
    %cst_51 = arith.constant dense<0.000000e+00> : vector<1xf32>
    %87 = vector.multi_reduction <add>, %86, %cst_51 [1, 2] : vector<1x4x256xf32> to vector<1xf32>
    %88 = vector.shape_cast %87 : vector<1xf32> to vector<1x1x1xf32>
    %89 = vector.extract %88[0, 0, 0] : f32 from vector<1x1x1xf32>
    %90 = arith.addf %48, %89 : f32
    %cst_52 = arith.constant 0.000000e+00 : f32
    %91 = vector.broadcast %cst_52 : f32 to vector<1x8x128xf32>
    %92 = vector.broadcast %90 : f32 to vector<1x8x128xf32>
    %93 = arith.addf %91, %92 : vector<1x8x128xf32>
    %c0_53 = arith.constant 0 : index
    %c0_54 = arith.constant 0 : index
    %c0_55 = arith.constant 0 : index
    %94 = vector.load %arg10[%c0_53, %c0_54, %c0_55] : memref<1x8x128xf32, #tpu.memory_space<vmem>>, vector<1x8x128xf32>
    tpu.vector_store %arg10[%c0_53, %c0_54, %c0_55], %93 {strides = array<i32>} : memref<1x8x128xf32, #tpu.memory_space<vmem>>, vector<1x8x128xf32>,
    return
  }
  func.func @transform_0(%arg0: i32) -> i32 {
    %c0_i32 = arith.constant 0 : i32
    %c0_i32_0 = arith.constant 0 : i32
    return %c0_i32 : i32
  }
  func.func @transform_1(%arg0: i32) -> (i32, i32, i32) {
    %c0_i32 = arith.constant 0 : i32
    %c0_i32_0 = arith.constant 0 : i32
    %c0_i32_1 = arith.constant 0 : i32
    return %arg0, %c0_i32, %c0_i32_0 : i32, i32, i32
  }
  func.func @transform_2(%arg0: i32) -> (i32, i32, i32) {
    %c0_i32 = arith.constant 0 : i32
    %c0_i32_0 = arith.constant 0 : i32
    %c0_i32_1 = arith.constant 0 : i32
    return %arg0, %c0_i32, %c0_i32_0 : i32, i32, i32
  }
  func.func @transform_3(%arg0: i32) -> (i32, i32, i32) {
    %c0_i32 = arith.constant 0 : i32
    %c0_i32_0 = arith.constant 0 : i32
    %c0_i32_1 = arith.constant 0 : i32
    return %arg0, %c0_i32, %c0_i32_0 : i32, i32, i32
  }
  func.func @transform_4(%arg0: i32) -> (i32, i32) {
    %c0_i32 = arith.constant 0 : i32
    %c0_i32_0 = arith.constant 0 : i32
    %c0_i32_1 = arith.constant 0 : i32
    return %c0_i32, %c0_i32_0 : i32, i32
  }
  func.func @transform_5(%arg0: i32) -> (i32, i32) {
    %c0_i32 = arith.constant 0 : i32
    %c0_i32_0 = arith.constant 0 : i32
    %c0_i32_1 = arith.constant 0 : i32
    return %c0_i32, %c0_i32_0 : i32, i32
  }
  func.func @transform_6(%arg0: i32) -> (i32, i32) {
    %c0_i32 = arith.constant 0 : i32
    %c0_i32_0 = arith.constant 0 : i32
    %c0_i32_1 = arith.constant 0 : i32
    return %c0_i32, %c0_i32_0 : i32, i32
  }
  func.func @transform_7(%arg0: i32) -> (i32, i32) {
    %c0_i32 = arith.constant 0 : i32
    %c0_i32_0 = arith.constant 0 : i32
    %c0_i32_1 = arith.constant 0 : i32
    return %c0_i32, %c0_i32_0 : i32, i32
  }
  func.func @transform_8(%arg0: i32) -> (i32, i32) {
    %c0_i32 = arith.constant 0 : i32
    %c0_i32_0 = arith.constant 0 : i32
    %c0_i32_1 = arith.constant 0 : i32
    return %c0_i32, %c0_i32_0 : i32, i32
  }
  func.func @transform_9(%arg0: i32) -> (i32, i32, i32) {
    %c0_i32 = arith.constant 0 : i32
    %c0_i32_0 = arith.constant 0 : i32
    %c0_i32_1 = arith.constant 0 : i32
    return %arg0, %c0_i32, %c0_i32_0 : i32, i32, i32
  }
}

</mosaic_0001>

<llo_original>
// kernel: tpu_custom_call.1
$region0: #{tpu_custom_call.1}
  #allocation0 [shape = 'u32[]', space=smem, size = 0x4, offset = 0x4, fixed_abs, tag = 'smem constant byte address 0x4 - core index']
  #allocation1 [shape = 'u32[144,128]{1,0:T(1,128)}', space=vmem, size = 0x12000, scoped, tag = 'internal scratch']
  #allocation2 [shape = 'f32[8,256]{1,0:T(8,128)}', space=vmem, size = 0x2000, scoped, tag = 'scratch operand']
  %s0 = inlined_call_operand.vmem [shape: f32[2], index: 0, kind: input, shape index: {}]
  %s1 = inlined_call_operand.vmem [shape: f32[2,4,256], index: 1, kind: input, shape index: {}]
  %s2 = inlined_call_operand.vmem [shape: f32[2,4,256], index: 2, kind: input, shape index: {}]
  %s3 = inlined_call_operand.vmem [shape: f32[2,4,256], index: 3, kind: input, shape index: {}]
  %s4 = inlined_call_operand.vmem [shape: f32[32,8], index: 4, kind: input, shape index: {}]
  %s5 = inlined_call_operand.vmem [shape: f32[4,32], index: 5, kind: input, shape index: {}]
  %s6 = inlined_call_operand.vmem [shape: f32[32,1], index: 6, kind: input, shape index: {}]
  %s7 = inlined_call_operand.vmem [shape: f32[32,1], index: 7, kind: input, shape index: {}]
  %s8 = inlined_call_operand.vmem [shape: f32[4,1], index: 8, kind: input, shape index: {}]
  %s9 = inlined_call_operand.hbm [shape: f32[1,8,128], index: 9, kind: output, shape index: {}]
  %s10 = sld [smem:[#allocation0]]
  $region50: #{tpu_custom_call.1} parent=0
    _
  %s12 = ssub.s32 1, %s10
  %s13 = scalar_select 0, %s12, %s10
  $region1: #{tpu_custom_call.1} parent=0
    #allocation3 [shape = 'u8[512]{0}', space=smem, size = 0x200, scoped, tag = 'input window, operand 0, single buffered']
    #allocation4 [shape = 's32[1]{0}', space=sflag, size = 0x4, scoped, tag = 'scoped memory for tpu_custom_call.1']
    #allocation5 [shape = 's32[1]{0}', space=sflag, size = 0x4, scoped, tag = 'scoped memory for tpu_custom_call.1']
    #allocation6 [shape = 'u8[4096]{0}', space=vmem, size = 0x1000, scoped, tag = 'output window, operand 0, single buffered']
    %14 = vsyncpa [#allocation5], 0
    %15 = vsyncpa [#allocation4], 0
    // Predicated region
    $region2: #{tpu_custom_call.1} parent=1 // pred_check
      _
    $region3: #{tpu_custom_call.1} parent=1 // pred_check_branch
      %17 = sbr.rel (0) target = $region5
    $region4: #{tpu_custom_call.1} parent=1 // pred_region
      %s19 = ssub.s32 16, 16
      %20 = vsyncadd [#allocation5], %s19
      %s22 = sshll.u32 %s0, 4
      %s23 = int_to_ptr.vmem [resolvable:$true] %s22
      %25 = dma.vmem_to_smem %s23, 16, [#allocation3], [#allocation5]
    $region5: #{tpu_custom_call.1} parent=1 // pred_fallthru
      _
    // Predicated region
    $region6: #{tpu_custom_call.1} parent=1 // pred_check
      _
    $region7: #{tpu_custom_call.1} parent=1 // pred_check_branch
      %27 = sbr.rel (0) target = $region9
    $region8: #{tpu_custom_call.1} parent=1 // pred_region
      _
    $region9: #{tpu_custom_call.1} parent=1 // pred_fallthru
      _
    // Predicated region
    $region10: #{tpu_custom_call.1} parent=1 // pred_check
      _
    $region11: #{tpu_custom_call.1} parent=1 // pred_check_branch
      %29 = sbr.rel (0) target = $region13
    $region12: #{tpu_custom_call.1} parent=1 // pred_region
      _
    $region13: #{tpu_custom_call.1} parent=1 // pred_fallthru
      _
    // Predicated region
    $region14: #{tpu_custom_call.1} parent=1 // pred_check
      _
    $region15: #{tpu_custom_call.1} parent=1 // pred_check_branch
      %31 = sbr.rel (0) target = $region17
    $region16: #{tpu_custom_call.1} parent=1 // pred_region
      _
    $region17: #{tpu_custom_call.1} parent=1 // pred_fallthru
      _
    // Predicated region
    $region18: #{tpu_custom_call.1} parent=1 // pred_check
      _
    $region19: #{tpu_custom_call.1} parent=1 // pred_check_branch
      %33 = sbr.rel (0) target = $region21
    $region20: #{tpu_custom_call.1} parent=1 // pred_region
      _
    $region21: #{tpu_custom_call.1} parent=1 // pred_fallthru
      _
    // Predicated region
    $region22: #{tpu_custom_call.1} parent=1 // pred_check
      _
    $region23: #{tpu_custom_call.1} parent=1 // pred_check_branch
      %35 = sbr.rel (0) target = $region25
    $region24: #{tpu_custom_call.1} parent=1 // pred_region
      _
    $region25: #{tpu_custom_call.1} parent=1 // pred_fallthru
      _
    // Predicated region
    $region26: #{tpu_custom_call.1} parent=1 // pred_check
      _
    $region27: #{tpu_custom_call.1} parent=1 // pred_check_branch
      %37 = sbr.rel (0) target = $region29
    $region28: #{tpu_custom_call.1} parent=1 // pred_region
      _
    $region29: #{tpu_custom_call.1} parent=1 // pred_fallthru
      _
    // Predicated region
    $region30: #{tpu_custom_call.1} parent=1 // pred_check
      _
    $region31: #{tpu_custom_call.1} parent=1 // pred_check_branch
      %39 = sbr.rel (0) target = $region33
    $region32: #{tpu_custom_call.1} parent=1 // pred_region
      _
    $region33: #{tpu_custom_call.1} parent=1 // pred_fallthru
      _
    // Predicated region
    $region34: #{tpu_custom_call.1} parent=1 // pred_check
      _
    $region35: #{tpu_custom_call.1} parent=1 // pred_check_branch
      %41 = sbr.rel (0) target = $region37
    $region36: #{tpu_custom_call.1} parent=1 // pred_region
      _
    $region37: #{tpu_custom_call.1} parent=1 // pred_fallthru
      _
    // Predicated region
    $region38: #{tpu_custom_call.1} parent=1 // pred_check
      _
    $region39: #{tpu_custom_call.1} parent=1 // pred_check_branch
      %43 = sbr.rel (0) target = $region41
    $region40: #{tpu_custom_call.1} parent=1 // pred_region
      %44 = dma.done [#allocation5], 16
    $region41: #{tpu_custom_call.1} parent=1 // pred_fallthru
      _
    %45 = sfence
    %s46 = smul.u32 0, 2
    %v47 = vld [vmem:[%s4] sm:$0xff]
    %v48 = vld [vmem:[%s4 + $0x8] sm:$0xff]
    %v49 = vld [vmem:[%s4 + $0x10] sm:$0xff]
    %v50 = vld [vmem:[%s4 + $0x18] sm:$0xff]
    %v51 = vld [vmem:[%s5] sm:$0xf]
    %v52 = vld [vmem:[%s6] sm:$0xff]
    %v53 = vld [vmem:[%s6 + $0x8] sm:$0xff]
    %v54 = vld [vmem:[%s6 + $0x10] sm:$0xff]
    %v55 = vld [vmem:[%s6 + $0x18] sm:$0xff]
    %v56 = vld [vmem:[%s7] sm:$0xff]
    %v57 = vld [vmem:[%s7 + $0x8] sm:$0xff]
    %v58 = vld [vmem:[%s7 + $0x10] sm:$0xff]
    %v59 = vld [vmem:[%s7 + $0x18] sm:$0xff]
    %v60 = vld [vmem:[%s8] sm:$0xf]
    %s61 = sld [smem:[#allocation3 + %s46]]
    %s62 = smul.f32 %s61, 2.0
    %s63 = smul.f32 %s62, 3.218876
    %v64 = vstv %s63
    %v65 = vmul.f32 %v64, 1.442695
    %v66 = vpow.pop %v65
    %s67 = vtos %v66
    %s68 = ssub.f32 %s67, 1.0
    %v69 = vrcp.pop 6.437752
    %s70 = vtos %v69
    %s71 = smul.f32 %s68, %s70
    %v72 = vstv %s71
    %v73 = vrsqrt.pop %v72
    %v74 = vmul.f32 %v72, %v73
    %vm75 = vcmp.eq.f32.partialorder %v72, inf
    %v76 = vsel %vm75, %v72, %v74
    %vm77 = vcmp.eq.f32.partialorder %v72, 0.0
    %v78 = vand.u32 %v72, 2147483648
    %v79 = vsel %vm77, %v78, %v76
    %s80 = vtos %v79
    %v81 = vld [vmem:[%s1] sm:$0xff]
    %v82 = vld [vmem:[%s2] sm:$0xff]
    %v83 = vld [vmem:[%s3] sm:$0xff]
    %v84 = vstv %s80
    %v85 = vmul.f32 %v83, %v84
    %v86 = vadd.f32 %v82, %v85
    %v88 = vcombine.high %v81, %v81
    %90 = vst [vmem:[#allocation2] sm:$0xf] %v81
    %91 = vst [vmem:[#allocation2 + $0x8] sm:$0xf] %v88
    %v93 = vcombine.low %v86, %v86
    %95 = vst [vmem:[#allocation2] sm:$0xf0] %v93
    %96 = vst [vmem:[#allocation2 + $0x8] sm:$0xf0] %v86
    %v97 = vstv %s61
    %v98 = vmul.f32 %v97, %v56
    %v99 = vmul.f32 %v97, %v57
    %v100 = vmul.f32 %v97, %v58
    %v101 = vmul.f32 %v97, %v59
    %v102 = vadd.f32 %v52, %v98
    %v103 = vadd.f32 %v53, %v99
    %v104 = vadd.f32 %v54, %v100
    %v105 = vadd.f32 %v55, %v101
    %v106 = vld [vmem:[#allocation2] sm:$0xff]
    %v107 = vld [vmem:[#allocation2 + $0x8] sm:$0xff]
    %109 = vset.pattern.permute.xlu0 0
    %110 = vperm.xlu0 %109, %v102
    %v111 = vpop.permute.xlu0 %110
    %114 = vset.pattern.permute.xlu0 0
    %115 = vperm.xlu0 %114, %v103
    %v116 = vpop.permute.xlu0 %115
    %119 = vset.pattern.permute.xlu0 0
    %120 = vperm.xlu0 %119, %v104
    %v121 = vpop.permute.xlu0 %120
    %124 = vset.pattern.permute.xlu0 0
    %125 = vperm.xlu0 %124, %v105
    %v126 = vpop.permute.xlu0 %125
    %vm128 = vcmask 64512
    %v130 = vsel %vm128, %v47, 0
    %v133 = vsel %vm128, %v48, 0
    %v136 = vsel %vm128, %v49, 0
    %v139 = vsel %vm128, %v50, 0
    %141 = vmatprep.subr.mxu0 %v107
    %142 = vmatpush1.msra.mxu0 %v106
    %143 = vmatprep.subr.mxu0 0.0
    %144 = vmatpush1.msra.mxu0 0.0
    %145 = vmatprep.subr.mxu0 0.0
    %146 = vmatpush1.msra.mxu0 0.0
    %147 = vmatprep.subr.mxu0 0.0
    %148 = vmatpush1.msra.mxu0 0.0
    %149 = vmatprep.subr.mxu0 0.0
    %150 = vmatpush1.msra.mxu0 0.0
    %151 = vmatprep.subr.mxu0 0.0
    %152 = vmatpush1.msra.mxu0 0.0
    %153 = vmatprep.subr.mxu0 0.0
    %154 = vmatpush1.msra.mxu0 0.0
    %155 = vmatprep.subr.mxu0 0.0
    %156 = vmatpush1.msra.mxu0 0.0
    %157 = vmatprep.subr.mxu0 0.0
    %158 = vmatpush1.msra.mxu0 0.0
    %159 = vmatprep.subr.mxu0 0.0
    %160 = vmatpush1.msra.mxu0 0.0
    %161 = vmatprep.subr.mxu0 0.0
    %162 = vmatpush1.msra.mxu0 0.0
    %163 = vmatprep.subr.mxu0 0.0
    %164 = vmatpush1.msra.mxu0 0.0
    %165 = vmatprep.subr.mxu0 0.0
    %166 = vmatpush1.msra.mxu0 0.0
    %167 = vmatprep.subr.mxu0 0.0
    %168 = vmatpush1.msra.mxu0 0.0
    %169 = vmatprep.subr.mxu0 0.0
    %170 = vmatpush1.msra.mxu0 0.0
    %171 = vmatprep.subr.mxu0 0.0
    %172 = vmatpush1.msra.mxu0 0.0
    %173 = vmatprep.subr.mxu0 0.0
    %174 = vmatpush1.msra.mxu0 0.0
    %175 = vmatprep.subr.mxu0 0.0
    %176 = vmatpush1.msra.mxu0 0.0
    %177 = vmatprep.subr.mxu0 0.0
    %178 = vmatpush1.msra.mxu0 0.0
    %179 = vmatprep.subr.mxu0 0.0
    %180 = vmatpush1.msra.mxu0 0.0
    %181 = vmatprep.subr.mxu0 0.0
    %182 = vmatpush1.msra.mxu0 0.0
    %183 = vmatprep.subr.mxu0 0.0
    %184 = vmatpush1.msra.mxu0 0.0
    %185 = vmatprep.subr.mxu0 0.0
    %186 = vmatpush1.msra.mxu0 0.0
    %187 = vmatprep.subr.mxu0 0.0
    %188 = vmatpush1.msra.mxu0 0.0
    %189 = vmatprep.subr.mxu0 0.0
    %190 = vmatpush1.msra.mxu0 0.0
    %191 = vmatprep.subr.mxu0 0.0
    %192 = vmatpush1.msra.mxu0 0.0
    %193 = vmatprep.subr.mxu0 0.0
    %194 = vmatpush1.msra.mxu0 0.0
    %195 = vmatprep.subr.mxu0 0.0
    %196 = vmatpush1.msra.mxu0 0.0
    %197 = vmatprep.subr.mxu0 0.0
    %198 = vmatpush1.msra.mxu0 0.0
    %199 = vmatprep.subr.mxu0 0.0
    %200 = vmatpush1.msra.mxu0 0.0
    %201 = vmatprep.subr.mxu0 0.0
    %202 = vmatpush1.msra.mxu0 0.0
    %203 = vmatprep.subr.mxu0 0.0
    %204 = vmatpush1.msra.mxu0 0.0
    %205 = vmatprep.mubr.f32.mxu0 0.0
    %206 = vmatmul.mubr.f32.gmra.mrb[0].mxu0 %v130
    %v207 = vpop.f32.mrb[0].mxu0
    %v208 = vadd.f32 %v111, %v207
    %v209 = vpop.f32.mrb[0].mxu0
    %v210 = vadd.f32 %v111, %v209
    %211 = vmatprep.mubr.f32.mxu0 0.0
    %212 = vmatmul.mubr.f32.gmra.mrb[0].mxu0 %v133
    %v213 = vpop.f32.mrb[0].mxu0
    %v214 = vadd.f32 %v116, %v213
    %v215 = vpop.f32.mrb[0].mxu0
    %v216 = vadd.f32 %v116, %v215
    %217 = vmatprep.mubr.f32.mxu0 0.0
    %218 = vmatmul.mubr.f32.gmra.mrb[0].mxu0 %v136
    %v219 = vpop.f32.mrb[0].mxu0
    %v220 = vadd.f32 %v121, %v219
    %v221 = vpop.f32.mrb[0].mxu0
    %v222 = vadd.f32 %v121, %v221
    %223 = vmatprep.mubr.f32.mxu0 0.0
    %224 = vmatmul.mubr.f32.gmra.mrb[0].mxu0 %v139
    %v225 = vpop.f32.mrb[0].mxu0
    %v226 = vadd.f32 %v126, %v225
    %v227 = vpop.f32.mrb[0].mxu0
    %v228 = vadd.f32 %v126, %v227
    %229 = vdwg.mxu0
    %v230 = vmax.f32 %v208, 0.0
    %v231 = vmax.f32 %v210, 0.0
    %v232 = vmax.f32 %v214, 0.0
    %v233 = vmax.f32 %v216, 0.0
    %v234 = vmax.f32 %v220, 0.0
    %v235 = vmax.f32 %v222, 0.0
    %v236 = vmax.f32 %v226, 0.0
    %v237 = vmax.f32 %v228, 0.0
    %239 = vset.pattern.permute.xlu0 0
    %240 = vperm.xlu0 %239, %v60
    %v241 = vpop.permute.xlu0 %240
    %vm243 = vcmask 261120
    %v245 = vsel %vm243, %v51, 0
    %247 = vmatprep.subr.mxu0 %v231
    %248 = vmatpush1.msra.mxu0 %v230
    %249 = vmatprep.subr.mxu0 %v233
    %250 = vmatpush1.msra.mxu0 %v232
    %251 = vmatprep.subr.mxu0 %v235
    %252 = vmatpush1.msra.mxu0 %v234
    %253 = vmatprep.subr.mxu0 %v237
    %254 = vmatpush1.msra.mxu0 %v236
    %255 = vmatprep.subr.mxu0 0.0
    %256 = vmatpush1.msra.mxu0 0.0
    %257 = vmatprep.subr.mxu0 0.0
    %258 = vmatpush1.msra.mxu0 0.0
    %259 = vmatprep.subr.mxu0 0.0
    %260 = vmatpush1.msra.mxu0 0.0
    %261 = vmatprep.subr.mxu0 0.0
    %262 = vmatpush1.msra.mxu0 0.0
    %263 = vmatprep.subr.mxu0 0.0
    %264 = vmatpush1.msra.mxu0 0.0
    %265 = vmatprep.subr.mxu0 0.0
    %266 = vmatpush1.msra.mxu0 0.0
    %267 = vmatprep.subr.mxu0 0.0
    %268 = vmatpush1.msra.mxu0 0.0
    %269 = vmatprep.subr.mxu0 0.0
    %270 = vmatpush1.msra.mxu0 0.0
    %271 = vmatprep.subr.mxu0 0.0
    %272 = vmatpush1.msra.mxu0 0.0
    %273 = vmatprep.subr.mxu0 0.0
    %274 = vmatpush1.msra.mxu0 0.0
    %275 = vmatprep.subr.mxu0 0.0
    %276 = vmatpush1.msra.mxu0 0.0
    %277 = vmatprep.subr.mxu0 0.0
    %278 = vmatpush1.msra.mxu0 0.0
    %279 = vmatprep.subr.mxu0 0.0
    %280 = vmatpush1.msra.mxu0 0.0
    %281 = vmatprep.subr.mxu0 0.0
    %282 = vmatpush1.msra.mxu0 0.0
    %283 = vmatprep.subr.mxu0 0.0
    %284 = vmatpush1.msra.mxu0 0.0
    %285 = vmatprep.subr.mxu0 0.0
    %286 = vmatpush1.msra.mxu0 0.0
    %287 = vmatprep.subr.mxu0 0.0
    %288 = vmatpush1.msra.mxu0 0.0
    %289 = vmatprep.subr.mxu0 0.0
    %290 = vmatpush1.msra.mxu0 0.0
    %291 = vmatprep.subr.mxu0 0.0
    %292 = vmatpush1.msra.mxu0 0.0
    %293 = vmatprep.subr.mxu0 0.0
    %294 = vmatpush1.msra.mxu0 0.0
    %295 = vmatprep.subr.mxu0 0.0
    %296 = vmatpush1.msra.mxu0 0.0
    %297 = vmatprep.subr.mxu0 0.0
    %298 = vmatpush1.msra.mxu0 0.0
    %299 = vmatprep.subr.mxu0 0.0
    %300 = vmatpush1.msra.mxu0 0.0
    %301 = vmatprep.subr.mxu0 0.0
    %302 = vmatpush1.msra.mxu0 0.0
    %303 = vmatprep.subr.mxu0 0.0
    %304 = vmatpush1.msra.mxu0 0.0
    %305 = vmatprep.subr.mxu0 0.0
    %306 = vmatpush1.msra.mxu0 0.0
    %307 = vmatprep.subr.mxu0 0.0
    %308 = vmatpush1.msra.mxu0 0.0
    %309 = vmatprep.subr.mxu0 0.0
    %310 = vmatpush1.msra.mxu0 0.0
    %311 = vmatprep.mubr.f32.mxu0 0.0
    %312 = vmatmul.mubr.f32.gmra.mrb[0].mxu0 %v245
    %v313 = vpop.f32.mrb[0].mxu0
    %v314 = vadd.f32 %v241, %v313
    %v315 = vpop.f32.mrb[0].mxu0
    %v316 = vadd.f32 %v241, %v315
    %317 = vdwg.mxu0
    %v318 = vmul.f32 %v314, %v84
    %v319 = vmul.f32 %v316, %v84
    %v321 = vcombine.high %v83, %v83
    %v323 = vadd.f32 %v318, %v83
    %v324 = vadd.f32 %v319, %v321
    %v325 = vmul.f32 %v323, %v323
    %v326 = vmul.f32 %v324, %v324
    %vm327 = vcmask 1043456
    %v328 = vsel %vm327, %v325, 0.0
    %v329 = vsel %vm327, %v326, 0.0
    %v330 = vadd.f32 %v328, %v329
    %331 = vadd.xlane.f32.xlu0 %v330
    %v332 = vpop.xlane.xlu0 %331
    %v333 = vrot.slane %v332, 4
    %v334 = vadd.f32 %v332, %v333
    %v335 = vrot.slane %v334, 2
    %v336 = vadd.f32 %v334, %v335
    %v337 = vrot.slane %v336, 1
    %v338 = vadd.f32 %v336, %v337
    %s339 = vtos %v338
    %s340 = sadd.f32 %s339, 0.0
    %s341 = sadd.s32 %s46, 1
    %s342 = sld [smem:[#allocation3 + %s341]]
    %s343 = smul.f32 %s342, 2.0
    %s344 = smul.f32 %s343, 3.218876
    %v345 = vstv %s344
    %v346 = vmul.f32 %v345, 1.442695
    %v347 = vpow.pop %v346
    %s348 = vtos %v347
    %s349 = ssub.f32 %s348, 1.0
    %v350 = vrcp.pop 6.437752
    %s351 = vtos %v350
    %s352 = smul.f32 %s349, %s351
    %v353 = vstv %s352
    %v354 = vrsqrt.pop %v353
    %v355 = vmul.f32 %v353, %v354
    %vm356 = vcmp.eq.f32.partialorder %v353, inf
    %v357 = vsel %vm356, %v353, %v355
    %vm358 = vcmp.eq.f32.partialorder %v353, 0.0
    %v359 = vand.u32 %v353, 2147483648
    %v360 = vsel %vm358, %v359, %v357
    %s361 = vtos %v360
    %s362 = scalar_lea.vmem %s1, 8
    %v363 = vld [vmem:[%s362] sm:$0xff]
    %s364 = scalar_lea.vmem %s2, 8
    %v365 = vld [vmem:[%s364] sm:$0xff]
    %s366 = scalar_lea.vmem %s3, 8
    %v367 = vld [vmem:[%s366] sm:$0xff]
    %v368 = vstv %s361
    %v369 = vmul.f32 %v367, %v368
    %v370 = vadd.f32 %v365, %v369
    %v372 = vcombine.high %v363, %v363
    %374 = vst [vmem:[#allocation2] sm:$0xf] %v363
    %375 = vst [vmem:[#allocation2 + $0x8] sm:$0xf] %v372
    %v377 = vcombine.low %v370, %v370
    %379 = vst [vmem:[#allocation2] sm:$0xf0] %v377
    %380 = vst [vmem:[#allocation2 + $0x8] sm:$0xf0] %v370
    %v381 = vstv %s342
    %v382 = vmul.f32 %v381, %v56
    %v383 = vmul.f32 %v381, %v57
    %v384 = vmul.f32 %v381, %v58
    %v385 = vmul.f32 %v381, %v59
    %v386 = vadd.f32 %v52, %v382
    %v387 = vadd.f32 %v53, %v383
    %v388 = vadd.f32 %v54, %v384
    %v389 = vadd.f32 %v55, %v385
    %v390 = vld [vmem:[#allocation2] sm:$0xff]
    %v391 = vld [vmem:[#allocation2 + $0x8] sm:$0xff]
    %393 = vset.pattern.permute.xlu0 0
    %394 = vperm.xlu0 %393, %v386
    %v395 = vpop.permute.xlu0 %394
    %398 = vset.pattern.permute.xlu0 0
    %399 = vperm.xlu0 %398, %v387
    %v400 = vpop.permute.xlu0 %399
    %403 = vset.pattern.permute.xlu0 0
    %404 = vperm.xlu0 %403, %v388
    %v405 = vpop.permute.xlu0 %404
    %408 = vset.pattern.permute.xlu0 0
    %409 = vperm.xlu0 %408, %v389
    %v410 = vpop.permute.xlu0 %409
    %412 = vmatprep.subr.mxu0 %v391
    %413 = vmatpush1.msra.mxu0 %v390
    %414 = vmatprep.subr.mxu0 0.0
    %415 = vmatpush1.msra.mxu0 0.0
    %416 = vmatprep.subr.mxu0 0.0
    %417 = vmatpush1.msra.mxu0 0.0
    %418 = vmatprep.subr.mxu0 0.0
    %419 = vmatpush1.msra.mxu0 0.0
    %420 = vmatprep.subr.mxu0 0.0
    %421 = vmatpush1.msra.mxu0 0.0
    %422 = vmatprep.subr.mxu0 0.0
    %423 = vmatpush1.msra.mxu0 0.0
    %424 = vmatprep.subr.mxu0 0.0
    %425 = vmatpush1.msra.mxu0 0.0
    %426 = vmatprep.subr.mxu0 0.0
    %427 = vmatpush1.msra.mxu0 0.0
    %428 = vmatprep.subr.mxu0 0.0
    %429 = vmatpush1.msra.mxu0 0.0
    %430 = vmatprep.subr.mxu0 0.0
    %431 = vmatpush1.msra.mxu0 0.0
    %432 = vmatprep.subr.mxu0 0.0
    %433 = vmatpush1.msra.mxu0 0.0
    %434 = vmatprep.subr.mxu0 0.0
    %435 = vmatpush1.msra.mxu0 0.0
    %436 = vmatprep.subr.mxu0 0.0
    %437 = vmatpush1.msra.mxu0 0.0
    %438 = vmatprep.subr.mxu0 0.0
    %439 = vmatpush1.msra.mxu0 0.0
    %440 = vmatprep.subr.mxu0 0.0
    %441 = vmatpush1.msra.mxu0 0.0
    %442 = vmatprep.subr.mxu0 0.0
    %443 = vmatpush1.msra.mxu0 0.0
    %444 = vmatprep.subr.mxu0 0.0
    %445 = vmatpush1.msra.mxu0 0.0
    %446 = vmatprep.subr.mxu0 0.0
    %447 = vmatpush1.msra.mxu0 0.0
    %448 = vmatprep.subr.mxu0 0.0
    %449 = vmatpush1.msra.mxu0 0.0
    %450 = vmatprep.subr.mxu0 0.0
    %451 = vmatpush1.msra.mxu0 0.0
    %452 = vmatprep.subr.mxu0 0.0
    %453 = vmatpush1.msra.mxu0 0.0
    %454 = vmatprep.subr.mxu0 0.0
    %455 = vmatpush1.msra.mxu0 0.0
    %456 = vmatprep.subr.mxu0 0.0
    %457 = vmatpush1.msra.mxu0 0.0
    %458 = vmatprep.subr.mxu0 0.0
    %459 = vmatpush1.msra.mxu0 0.0
    %460 = vmatprep.subr.mxu0 0.0
    %461 = vmatpush1.msra.mxu0 0.0
    %462 = vmatprep.subr.mxu0 0.0
    %463 = vmatpush1.msra.mxu0 0.0
    %464 = vmatprep.subr.mxu0 0.0
    %465 = vmatpush1.msra.mxu0 0.0
    %466 = vmatprep.subr.mxu0 0.0
    %467 = vmatpush1.msra.mxu0 0.0
    %468 = vmatprep.subr.mxu0 0.0
    %469 = vmatpush1.msra.mxu0 0.0
    %470 = vmatprep.subr.mxu0 0.0
    %471 = vmatpush1.msra.mxu0 0.0
    %472 = vmatprep.subr.mxu0 0.0
    %473 = vmatpush1.msra.mxu0 0.0
    %474 = vmatprep.subr.mxu0 0.0
    %475 = vmatpush1.msra.mxu0 0.0
    %476 = vmatprep.mubr.f32.mxu0 0.0
    %477 = vmatmul.mubr.f32.gmra.mrb[0].mxu0 %v130
    %v478 = vpop.f32.mrb[0].mxu0
    %v479 = vadd.f32 %v395, %v478
    %v480 = vpop.f32.mrb[0].mxu0
    %v481 = vadd.f32 %v395, %v480
    %482 = vmatprep.mubr.f32.mxu0 0.0
    %483 = vmatmul.mubr.f32.gmra.mrb[0].mxu0 %v133
    %v484 = vpop.f32.mrb[0].mxu0
    %v485 = vadd.f32 %v400, %v484
    %v486 = vpop.f32.mrb[0].mxu0
    %v487 = vadd.f32 %v400, %v486
    %488 = vmatprep.mubr.f32.mxu0 0.0
    %489 = vmatmul.mubr.f32.gmra.mrb[0].mxu0 %v136
    %v490 = vpop.f32.mrb[0].mxu0
    %v491 = vadd.f32 %v405, %v490
    %v492 = vpop.f32.mrb[0].mxu0
    %v493 = vadd.f32 %v405, %v492
    %494 = vmatprep.mubr.f32.mxu0 0.0
    %495 = vmatmul.mubr.f32.gmra.mrb[0].mxu0 %v139
    %v496 = vpop.f32.mrb[0].mxu0
    %v497 = vadd.f32 %v410, %v496
    %v498 = vpop.f32.mrb[0].mxu0
    %v499 = vadd.f32 %v410, %v498
    %500 = vdwg.mxu0
    %v501 = vmax.f32 %v479, 0.0
    %v502 = vmax.f32 %v481, 0.0
    %v503 = vmax.f32 %v485, 0.0
    %v504 = vmax.f32 %v487, 0.0
    %v505 = vmax.f32 %v491, 0.0
    %v506 = vmax.f32 %v493, 0.0
    %v507 = vmax.f32 %v497, 0.0
    %v508 = vmax.f32 %v499, 0.0
    %509 = vmatprep.subr.mxu0 %v502
    %510 = vmatpush1.msra.mxu0 %v501
    %511 = vmatprep.subr.mxu0 %v504
    %512 = vmatpush1.msra.mxu0 %v503
    %513 = vmatprep.subr.mxu0 %v506
    %514 = vmatpush1.msra.mxu0 %v505
    %515 = vmatprep.subr.mxu0 %v508
    %516 = vmatpush1.msra.mxu0 %v507
    %517 = vmatprep.subr.mxu0 0.0
    %518 = vmatpush1.msra.mxu0 0.0
    %519 = vmatprep.subr.mxu0 0.0
    %520 = vmatpush1.msra.mxu0 0.0
    %521 = vmatprep.subr.mxu0 0.0
    %522 = vmatpush1.msra.mxu0 0.0
    %523 = vmatprep.subr.mxu0 0.0
    %524 = vmatpush1.msra.mxu0 0.0
    %525 = vmatprep.subr.mxu0 0.0
    %526 = vmatpush1.msra.mxu0 0.0
    %527 = vmatprep.subr.mxu0 0.0
    %528 = vmatpush1.msra.mxu0 0.0
    %529 = vmatprep.subr.mxu0 0.0
    %530 = vmatpush1.msra.mxu0 0.0
    %531 = vmatprep.subr.mxu0 0.0
    %532 = vmatpush1.msra.mxu0 0.0
    %533 = vmatprep.subr.mxu0 0.0
    %534 = vmatpush1.msra.mxu0 0.0
    %535 = vmatprep.subr.mxu0 0.0
    %536 = vmatpush1.msra.mxu0 0.0
    %537 = vmatprep.subr.mxu0 0.0
    %538 = vmatpush1.msra.mxu0 0.0
    %539 = vmatprep.subr.mxu0 0.0
    %540 = vmatpush1.msra.mxu0 0.0
    %541 = vmatprep.subr.mxu0 0.0
    %542 = vmatpush1.msra.mxu0 0.0
    %543 = vmatprep.subr.mxu0 0.0
    %544 = vmatpush1.msra.mxu0 0.0
    %545 = vmatprep.subr.mxu0 0.0
    %546 = vmatpush1.msra.mxu0 0.0
    %547 = vmatprep.subr.mxu0 0.0
    %548 = vmatpush1.msra.mxu0 0.0
    %549 = vmatprep.subr.mxu0 0.0
    %550 = vmatpush1.msra.mxu0 0.0
    %551 = vmatprep.subr.mxu0 0.0
    %552 = vmatpush1.msra.mxu0 0.0
    %553 = vmatprep.subr.mxu0 0.0
    %554 = vmatpush1.msra.mxu0 0.0
    %555 = vmatprep.subr.mxu0 0.0
    %556 = vmatpush1.msra.mxu0 0.0
    %557 = vmatprep.subr.mxu0 0.0
    %558 = vmatpush1.msra.mxu0 0.0
    %559 = vmatprep.subr.mxu0 0.0
    %560 = vmatpush1.msra.mxu0 0.0
    %561 = vmatprep.subr.mxu0 0.0
    %562 = vmatpush1.msra.mxu0 0.0
    %563 = vmatprep.subr.mxu0 0.0
    %564 = vmatpush1.msra.mxu0 0.0
    %565 = vmatprep.subr.mxu0 0.0
    %566 = vmatpush1.msra.mxu0 0.0
    %567 = vmatprep.subr.mxu0 0.0
    %568 = vmatpush1.msra.mxu0 0.0
    %569 = vmatprep.subr.mxu0 0.0
    %570 = vmatpush1.msra.mxu0 0.0
    %571 = vmatprep.subr.mxu0 0.0
    %572 = vmatpush1.msra.mxu0 0.0
    %573 = vmatprep.mubr.f32.mxu0 0.0
    %574 = vmatmul.mubr.f32.gmra.mrb[0].mxu0 %v245
    %v575 = vpop.f32.mrb[0].mxu0
    %v576 = vadd.f32 %v241, %v575
    %v577 = vpop.f32.mrb[0].mxu0
    %v578 = vadd.f32 %v241, %v577
    %579 = vdwg.mxu0
    %v580 = vmul.f32 %v576, %v368
    %v581 = vmul.f32 %v578, %v368
    %v583 = vcombine.high %v367, %v367
    %v585 = vadd.f32 %v580, %v367
    %v586 = vadd.f32 %v581, %v583
    %v587 = vmul.f32 %v585, %v585
    %v588 = vmul.f32 %v586, %v586
    %v589 = vsel %vm327, %v587, 0.0
    %v590 = vsel %vm327, %v588, 0.0
    %v591 = vadd.f32 %v589, %v590
    %592 = vadd.xlane.f32.xlu0 %v591
    %v593 = vpop.xlane.xlu0 %592
    %v594 = vrot.slane %v593, 4
    %v595 = vadd.f32 %v593, %v594
    %v596 = vrot.slane %v595, 2
    %v597 = vadd.f32 %v595, %v596
    %v598 = vrot.slane %v597, 1
    %v599 = vadd.f32 %v597, %v598
    %s600 = vtos %v599
    %s601 = sadd.f32 %s340, %s600
    %v602 = vstv %s601
    %v603 = vadd.f32 %v602, 0.0
    %604 = vst [vmem:[#allocation6] sm:$0xff] %v603
    // Predicated region
    $region42: #{tpu_custom_call.1} parent=1 // pred_check
      _
    $region43: #{tpu_custom_call.1} parent=1 // pred_check_branch
      %606 = sbr.rel (0) target = $region45
    $region44: #{tpu_custom_call.1} parent=1 // pred_region
      %s608 = ssub.s32 128, 128
      %609 = vsyncadd [#allocation4], %s608
      %s611 = sshll.u32 [#allocation6], 4
      %s612 = int_to_ptr.vmem [resolvable:$true] %s611
      %614 = dma.vmem_to_hbm [thread:$0]  %s612, 128, %s9, [#allocation4]
    $region45: #{tpu_custom_call.1} parent=1 // pred_fallthru
      _
    // Predicated region
    $region46: #{tpu_custom_call.1} parent=1 // pred_check
      _
    $region47: #{tpu_custom_call.1} parent=1 // pred_check_branch
      %616 = sbr.rel (0) target = $region49
    $region48: #{tpu_custom_call.1} parent=1 // pred_region
      %617 = dma.done [#allocation4], 128
    $region49: #{tpu_custom_call.1} parent=1 // pred_fallthru
      _
    %618 = vsyncpa [#allocation4], 1
    %619 = vsyncpa [#allocation5], 1

</llo_original>
